<compile_context>
chip_gen: v6e
topology: v6e:2x2x1
jax: 0.10.0
libtpu: 0.0.40
codegen_flags: <defaults>
</compile_context>

<pallas_src>
import math
import functools

import jax
import jax.numpy as jnp
from jax.experimental import pallas as pl
from jax.experimental.pallas import tpu as pltpu


# -----------------------------------------------------------------------------
# Kernel: one batch element per grid step.
#   x_ref    : [1, S, H]     (this batch element's hidden states)
#   wqkv_ref : [H, 3H]       (fused Q/K/V projection, resident across the grid)
#   bqkv_ref : [1, 3H]       (fused bias, resident across the grid)
#   out_ref  : [1, S, H]
# -----------------------------------------------------------------------------
def _self_attention_kernel(x_ref, wqkv_ref, bqkv_ref, out_ref, *,
                           num_heads, head_dim):
    S = x_ref.shape[1]
    hidden = x_ref.shape[2]

    x = x_ref[0]                                                       # [S, H]

    # Fused Q/K/V projection: one MXU matmul with a 3H-wide (lane-dense) result.
    qkv = jnp.dot(x, wqkv_ref[...],
                  preferred_element_type=jnp.float32) + bqkv_ref[...]   # [S, 3H]

    scale = 1.0 / math.sqrt(head_dim)

    # Static (unrolled) loop over heads; each head is a pair of small 2-D matmuls.
    ctx_heads = []
    for h in range(num_heads):
        lo = h * head_dim
        hi = (h + 1) * head_dim
        q_h = qkv[:, lo:hi]                                            # [S, dh]
        k_h = qkv[:, hidden + lo: hidden + hi]                         # [S, dh]
        v_h = qkv[:, 2 * hidden + lo: 2 * hidden + hi]                 # [S, dh]

        scores = jnp.dot(q_h, k_h.T,
                         preferred_element_type=jnp.float32) * scale   # [S, S]

        # Numerically stable softmax over the key axis.
        m = jnp.max(scores, axis=-1, keepdims=True)
        p = jnp.exp(scores - m)
        probs = p / jnp.sum(p, axis=-1, keepdims=True)
        # TODO(synk): dropout on attention probs is identity (eval mode).

        ctx_heads.append(jnp.dot(probs, v_h,
                                 preferred_element_type=jnp.float32))  # [S, dh]

    # Lane-dense [S, H] store (heads re-interleaved exactly like the
    # permute(0,2,1,3).view(...) in the PyTorch reference).
    out_ref[0] = jnp.concatenate(ctx_heads, axis=-1).astype(out_ref.dtype)


# -----------------------------------------------------------------------------
# Wrapper: one gridded pallas_call over the batch dimension.
# -----------------------------------------------------------------------------
def self_attention(hidden_states, w_qkv, b_qkv, *, num_heads):
    B, S, hidden = hidden_states.shape
    assert hidden % num_heads == 0
    head_dim = hidden // num_heads

    kernel = functools.partial(_self_attention_kernel,
                               num_heads=num_heads, head_dim=head_dim)

    return pl.pallas_call(
        kernel,
        out_shape=jax.ShapeDtypeStruct((B, S, hidden), jnp.float32),
        grid=(B,),
        in_specs=[
            pl.BlockSpec((1, S, hidden), lambda b: (b, 0, 0)),      # per-batch tile
            pl.BlockSpec((hidden, 3 * hidden), lambda b: (0, 0)),   # resident weights
            pl.BlockSpec((1, 3 * hidden), lambda b: (0, 0)),        # resident bias
        ],
        out_specs=pl.BlockSpec((1, S, hidden), lambda b: (b, 0, 0)),
        compiler_params=pltpu.CompilerParams(
            dimension_semantics=("parallel",)),                      # megacore on v7x
    )(hidden_states, w_qkv, b_qkv)


# -----------------------------------------------------------------------------
# Pure-JAX reference (mirrors the PyTorch module exactly, dropout = identity).
# -----------------------------------------------------------------------------
def self_attention_ref(x, wq, bq, wk, bk, wv, bv, num_heads):
    B, S, hidden = x.shape
    dh = hidden // num_heads

    def proj(w, b):
        return x @ w.T + b

    def split(t):  # [B,S,H] -> [B,heads,S,dh]
        return t.reshape(B, S, num_heads, dh).transpose(0, 2, 1, 3)

    q, k, v = split(proj(wq, bq)), split(proj(wk, bk)), split(proj(wv, bv))
    scores = jnp.einsum("bhqd,bhkd->bhqk", q, k) / math.sqrt(dh)
    probs = jax.nn.softmax(scores, axis=-1)
    ctx = jnp.einsum("bhqk,bhkd->bhqd", probs, v)
    return ctx.transpose(0, 2, 1, 3).reshape(B, S, hidden)


# -----------------------------------------------------------------------------
# Example run
# -----------------------------------------------------------------------------
if __name__ == "__main__":
    BATCH, SEQ, HIDDEN, HEADS = 2, 8, 32, 4          # hidden % heads == 0

    key = jax.random.PRNGKey(0)
    kx, kq, kk, kv, kbq, kbk, kbv = jax.random.split(key, 7)

    x = jax.random.normal(kx, (BATCH, SEQ, HIDDEN), jnp.float32)

    std = math.sqrt(2.0 / (HIDDEN + HIDDEN))          # xavier-ish init
    wq = jax.random.normal(kq, (HIDDEN, HIDDEN), jnp.float32) * std
    wk = jax.random.normal(kk, (HIDDEN, HIDDEN), jnp.float32) * std
    wv = jax.random.normal(kv, (HIDDEN, HIDDEN), jnp.float32) * std
    bq = jax.random.normal(kbq, (HIDDEN,), jnp.float32) * 0.02
    bk = jax.random.normal(kbk, (HIDDEN,), jnp.float32) * 0.02
    bv = jax.random.normal(kbv, (HIDDEN,), jnp.float32) * 0.02

    # Fuse Q/K/V into one projection once in the wrapper (resident in VMEM).
    # nn.Linear computes x @ W^T, so the fused kernel-side weight is concat(...).T.
    w_qkv = jnp.concatenate([wq, wk, wv], axis=0).T            # [H, 3H]
    b_qkv = jnp.concatenate([bq, bk, bv], axis=0)[None, :]     # [1, 3H]

    out = self_attention(x, w_qkv, b_qkv, num_heads=HEADS)
    jax.block_until_ready(out)

    ref = self_attention_ref(x, wq, bq, wk, bk, wv, bv, HEADS)

    assert out.shape == (BATCH, SEQ, HIDDEN)
    assert bool(jnp.all(jnp.isfinite(out)))
    assert bool(jnp.allclose(out, ref, rtol=1e-4, atol=1e-4)), \
        f"max abs err = {float(jnp.max(jnp.abs(out - ref)))}"
    print("KERNEL_OK")
</pallas_src>

<mosaic_0001>
module attributes {stable_mosaic.version = 11 : i64} {
  func.func @_self_attention_kernel(%arg0: i32, %arg1: memref<1x8x32xf32, #tpu.memory_space<vmem>>, %arg2: memref<32x96xf32, #tpu.memory_space<vmem>>, %arg3: memref<1x96xf32, #tpu.memory_space<vmem>>, %arg4: memref<1x8x32xf32, #tpu.memory_space<vmem>>) attributes {dimension_semantics = [#tpu.dimension_semantics<parallel>], iteration_bounds = array<i64: 2>, scalar_prefetch = 0 : i64, scratch_operands = 0 : i64, tpu.core_type = #tpu.core_type<tc>, window_params = [{transform_indices = @transform_0, window_bounds = array<i64: 1, 8, 32>}, {pipeline_mode = #tpu.pipeline_mode<synchronous>, transform_indices = @transform_1, window_bounds = array<i64: 32, 96>}, {pipeline_mode = #tpu.pipeline_mode<synchronous>, transform_indices = @transform_2, window_bounds = array<i64: 1, 96>}, {transform_indices = @transform_3, window_bounds = array<i64: 1, 8, 32>}]} {
    %c0 = arith.constant 0 : index
    %c0_0 = arith.constant 0 : index
    %c0_1 = arith.constant 0 : index
    %0 = vector.load %arg1[%c0, %c0_0, %c0_1] : memref<1x8x32xf32, #tpu.memory_space<vmem>>, vector<1x8x32xf32>
    %1 = vector.shape_cast %0 : vector<1x8x32xf32> to vector<8x32xf32>
    %c0_2 = arith.constant 0 : index
    %c0_3 = arith.constant 0 : index
    %2 = vector.load %arg2[%c0_2, %c0_3] : memref<32x96xf32, #tpu.memory_space<vmem>>, vector<32x96xf32>
    %cst = arith.constant dense<0.000000e+00> : vector<8x96xf32>
    %3 = tpu.matmul %1, %2, %cst {dimension_numbers = #tpu.dot_dimension_numbers<[1], [0], [0], [1], [0, 0, 1, 1], [], []>} : vector<8x32xf32>, vector<32x96xf32>, vector<8x96xf32> -> vector<8x96xf32>
    %c0_4 = arith.constant 0 : index
    %c0_5 = arith.constant 0 : index
    %4 = vector.load %arg3[%c0_4, %c0_5] : memref<1x96xf32, #tpu.memory_space<vmem>>, vector<1x96xf32>
    %5 = vector.broadcast %4 : vector<1x96xf32> to vector<8x96xf32>
    %6 = arith.addf %3, %5 : vector<8x96xf32>
    %7 = vector.extract_strided_slice %6 {offsets = [0, 0], sizes = [8, 8], strides = [1, 1]} : vector<8x96xf32> to vector<8x8xf32>
    %8 = vector.extract_strided_slice %6 {offsets = [0, 32], sizes = [8, 8], strides = [1, 1]} : vector<8x96xf32> to vector<8x8xf32>
    %9 = vector.extract_strided_slice %6 {offsets = [0, 64], sizes = [8, 8], strides = [1, 1]} : vector<8x96xf32> to vector<8x8xf32>
    %10 = tpu.transpose %8, [1, 0] : vector<8x8xf32> -> vector<8x8xf32>
    %cst_6 = arith.constant dense<0.000000e+00> : vector<8x8xf32>
    %11 = tpu.matmul %7, %10, %cst_6 {dimension_numbers = #tpu.dot_dimension_numbers<[1], [0], [0], [1], [0, 0, 1, 1], [], []>} : vector<8x8xf32>, vector<8x8xf32>, vector<8x8xf32> -> vector<8x8xf32>
    %cst_7 = arith.constant 0.353553385 : f32
    %12 = vector.broadcast %cst_7 : f32 to vector<8x8xf32>
    %13 = arith.mulf %11, %12 : vector<8x8xf32>
    %cst_8 = arith.constant dense<0xFF800000> : vector<8xf32>
    %14 = vector.multi_reduction <maximumf>, %13, %cst_8 [1] : vector<8x8xf32> to vector<8xf32>
    %15 = vector.shape_cast %14 : vector<8xf32> to vector<8x1xf32>
    %16 = vector.broadcast %15 : vector<8x1xf32> to vector<8x8xf32>
    %17 = arith.subf %13, %16 : vector<8x8xf32>
    %18 = math.exp %17 : vector<8x8xf32>
    %cst_9 = arith.constant dense<0.000000e+00> : vector<8xf32>
    %19 = vector.multi_reduction <add>, %18, %cst_9 [1] : vector<8x8xf32> to vector<8xf32>
    %20 = vector.shape_cast %19 : vector<8xf32> to vector<8x1xf32>
    %21 = vector.broadcast %20 : vector<8x1xf32> to vector<8x8xf32>
    %22 = arith.divf %18, %21 : vector<8x8xf32>
    %cst_10 = arith.constant dense<0.000000e+00> : vector<8x8xf32>
    %23 = tpu.matmul %22, %9, %cst_10 {dimension_numbers = #tpu.dot_dimension_numbers<[1], [0], [0], [1], [0, 0, 1, 1], [], []>} : vector<8x8xf32>, vector<8x8xf32>, vector<8x8xf32> -> vector<8x8xf32>
    %24 = vector.extract_strided_slice %6 {offsets = [0, 8], sizes = [8, 8], strides = [1, 1]} : vector<8x96xf32> to vector<8x8xf32>
    %25 = vector.extract_strided_slice %6 {offsets = [0, 40], sizes = [8, 8], strides = [1, 1]} : vector<8x96xf32> to vector<8x8xf32>
    %26 = vector.extract_strided_slice %6 {offsets = [0, 72], sizes = [8, 8], strides = [1, 1]} : vector<8x96xf32> to vector<8x8xf32>
    %27 = tpu.transpose %25, [1, 0] : vector<8x8xf32> -> vector<8x8xf32>
    %cst_11 = arith.constant dense<0.000000e+00> : vector<8x8xf32>
    %28 = tpu.matmul %24, %27, %cst_11 {dimension_numbers = #tpu.dot_dimension_numbers<[1], [0], [0], [1], [0, 0, 1, 1], [], []>} : vector<8x8xf32>, vector<8x8xf32>, vector<8x8xf32> -> vector<8x8xf32>
    %cst_12 = arith.constant 0.353553385 : f32
    %29 = vector.broadcast %cst_12 : f32 to vector<8x8xf32>
    %30 = arith.mulf %28, %29 : vector<8x8xf32>
    %cst_13 = arith.constant dense<0xFF800000> : vector<8xf32>
    %31 = vector.multi_reduction <maximumf>, %30, %cst_13 [1] : vector<8x8xf32> to vector<8xf32>
    %32 = vector.shape_cast %31 : vector<8xf32> to vector<8x1xf32>
    %33 = vector.broadcast %32 : vector<8x1xf32> to vector<8x8xf32>
    %34 = arith.subf %30, %33 : vector<8x8xf32>
    %35 = math.exp %34 : vector<8x8xf32>
    %cst_14 = arith.constant dense<0.000000e+00> : vector<8xf32>
    %36 = vector.multi_reduction <add>, %35, %cst_14 [1] : vector<8x8xf32> to vector<8xf32>
    %37 = vector.shape_cast %36 : vector<8xf32> to vector<8x1xf32>
    %38 = vector.broadcast %37 : vector<8x1xf32> to vector<8x8xf32>
    %39 = arith.divf %35, %38 : vector<8x8xf32>
    %cst_15 = arith.constant dense<0.000000e+00> : vector<8x8xf32>
    %40 = tpu.matmul %39, %26, %cst_15 {dimension_numbers = #tpu.dot_dimension_numbers<[1], [0], [0], [1], [0, 0, 1, 1], [], []>} : vector<8x8xf32>, vector<8x8xf32>, vector<8x8xf32> -> vector<8x8xf32>
    %41 = vector.extract_strided_slice %6 {offsets = [0, 16], sizes = [8, 8], strides = [1, 1]} : vector<8x96xf32> to vector<8x8xf32>
    %42 = vector.extract_strided_slice %6 {offsets = [0, 48], sizes = [8, 8], strides = [1, 1]} : vector<8x96xf32> to vector<8x8xf32>
    %43 = vector.extract_strided_slice %6 {offsets = [0, 80], sizes = [8, 8], strides = [1, 1]} : vector<8x96xf32> to vector<8x8xf32>
    %44 = tpu.transpose %42, [1, 0] : vector<8x8xf32> -> vector<8x8xf32>
    %cst_16 = arith.constant dense<0.000000e+00> : vector<8x8xf32>
    %45 = tpu.matmul %41, %44, %cst_16 {dimension_numbers = #tpu.dot_dimension_numbers<[1], [0], [0], [1], [0, 0, 1, 1], [], []>} : vector<8x8xf32>, vector<8x8xf32>, vector<8x8xf32> -> vector<8x8xf32>
    %cst_17 = arith.constant 0.353553385 : f32
    %46 = vector.broadcast %cst_17 : f32 to vector<8x8xf32>
    %47 = arith.mulf %45, %46 : vector<8x8xf32>
    %cst_18 = arith.constant dense<0xFF800000> : vector<8xf32>
    %48 = vector.multi_reduction <maximumf>, %47, %cst_18 [1] : vector<8x8xf32> to vector<8xf32>
    %49 = vector.shape_cast %48 : vector<8xf32> to vector<8x1xf32>
    %50 = vector.broadcast %49 : vector<8x1xf32> to vector<8x8xf32>
    %51 = arith.subf %47, %50 : vector<8x8xf32>
    %52 = math.exp %51 : vector<8x8xf32>
    %cst_19 = arith.constant dense<0.000000e+00> : vector<8xf32>
    %53 = vector.multi_reduction <add>, %52, %cst_19 [1] : vector<8x8xf32> to vector<8xf32>
    %54 = vector.shape_cast %53 : vector<8xf32> to vector<8x1xf32>
    %55 = vector.broadcast %54 : vector<8x1xf32> to vector<8x8xf32>
    %56 = arith.divf %52, %55 : vector<8x8xf32>
    %cst_20 = arith.constant dense<0.000000e+00> : vector<8x8xf32>
    %57 = tpu.matmul %56, %43, %cst_20 {dimension_numbers = #tpu.dot_dimension_numbers<[1], [0], [0], [1], [0, 0, 1, 1], [], []>} : vector<8x8xf32>, vector<8x8xf32>, vector<8x8xf32> -> vector<8x8xf32>
    %58 = vector.extract_strided_slice %6 {offsets = [0, 24], sizes = [8, 8], strides = [1, 1]} : vector<8x96xf32> to vector<8x8xf32>
    %59 = vector.extract_strided_slice %6 {offsets = [0, 56], sizes = [8, 8], strides = [1, 1]} : vector<8x96xf32> to vector<8x8xf32>
    %60 = vector.extract_strided_slice %6 {offsets = [0, 88], sizes = [8, 8], strides = [1, 1]} : vector<8x96xf32> to vector<8x8xf32>
    %61 = tpu.transpose %59, [1, 0] : vector<8x8xf32> -> vector<8x8xf32>
    %cst_21 = arith.constant dense<0.000000e+00> : vector<8x8xf32>
    %62 = tpu.matmul %58, %61, %cst_21 {dimension_numbers = #tpu.dot_dimension_numbers<[1], [0], [0], [1], [0, 0, 1, 1], [], []>} : vector<8x8xf32>, vector<8x8xf32>, vector<8x8xf32> -> vector<8x8xf32>
    %cst_22 = arith.constant 0.353553385 : f32
    %63 = vector.broadcast %cst_22 : f32 to vector<8x8xf32>
    %64 = arith.mulf %62, %63 : vector<8x8xf32>
    %cst_23 = arith.constant dense<0xFF800000> : vector<8xf32>
    %65 = vector.multi_reduction <maximumf>, %64, %cst_23 [1] : vector<8x8xf32> to vector<8xf32>
    %66 = vector.shape_cast %65 : vector<8xf32> to vector<8x1xf32>
    %67 = vector.broadcast %66 : vector<8x1xf32> to vector<8x8xf32>
    %68 = arith.subf %64, %67 : vector<8x8xf32>
    %69 = math.exp %68 : vector<8x8xf32>
    %cst_24 = arith.constant dense<0.000000e+00> : vector<8xf32>
    %70 = vector.multi_reduction <add>, %69, %cst_24 [1] : vector<8x8xf32> to vector<8xf32>
    %71 = vector.shape_cast %70 : vector<8xf32> to vector<8x1xf32>
    %72 = vector.broadcast %71 : vector<8x1xf32> to vector<8x8xf32>
    %73 = arith.divf %69, %72 : vector<8x8xf32>
    %cst_25 = arith.constant dense<0.000000e+00> : vector<8x8xf32>
    %74 = tpu.matmul %73, %60, %cst_25 {dimension_numbers = #tpu.dot_dimension_numbers<[1], [0], [0], [1], [0, 0, 1, 1], [], []>} : vector<8x8xf32>, vector<8x8xf32>, vector<8x8xf32> -> vector<8x8xf32>
    %75 = tpu.concatenate %23, %40, %57, %74 in 1 : vector<8x8xf32>, vector<8x8xf32>, vector<8x8xf32>, vector<8x8xf32> -> vector<8x32xf32>
    %c0_26 = arith.constant 0 : index
    %c0_27 = arith.constant 0 : index
    %c0_28 = arith.constant 0 : index
    %76 = vector.load %arg4[%c0_26, %c0_27, %c0_28] : memref<1x8x32xf32, #tpu.memory_space<vmem>>, vector<1x8x32xf32>
    %77 = vector.shape_cast %76 : vector<1x8x32xf32> to vector<8x32xf32>
    %78 = vector.shape_cast %75 : vector<8x32xf32> to vector<1x8x32xf32>
    tpu.vector_store %arg4[%c0_26, %c0_27, %c0_28], %78 {strides = array<i32>} : memref<1x8x32xf32, #tpu.memory_space<vmem>>, vector<1x8x32xf32>,
    return
  }
  func.func @transform_0(%arg0: i32) -> (i32, i32, i32) {
    %c0_i32 = arith.constant 0 : i32
    %c0_i32_0 = arith.constant 0 : i32
    %c0_i32_1 = arith.constant 0 : i32
    return %arg0, %c0_i32, %c0_i32_0 : i32, i32, i32
  }
  func.func @transform_1(%arg0: i32) -> (i32, i32) {
    %c0_i32 = arith.constant 0 : i32
    %c0_i32_0 = arith.constant 0 : i32
    %c0_i32_1 = arith.constant 0 : i32
    return %c0_i32, %c0_i32_0 : i32, i32
  }
  func.func @transform_2(%arg0: i32) -> (i32, i32) {
    %c0_i32 = arith.constant 0 : i32
    %c0_i32_0 = arith.constant 0 : i32
    %c0_i32_1 = arith.constant 0 : i32
    return %c0_i32, %c0_i32_0 : i32, i32
  }
  func.func @transform_3(%arg0: i32) -> (i32, i32, i32) {
    %c0_i32 = arith.constant 0 : i32
    %c0_i32_0 = arith.constant 0 : i32
    %c0_i32_1 = arith.constant 0 : i32
    return %arg0, %c0_i32, %c0_i32_0 : i32, i32, i32
  }
}

</mosaic_0001>

<llo_original>
// kernel: tpu_custom_call.1
$region0: #{tpu_custom_call.1}
  #allocation0 [shape = 'u32[]', space=smem, size = 0x4, offset = 0x4, fixed_abs, tag = 'smem constant byte address 0x4 - core index']
  #allocation1 [shape = 'u32[144,128]{1,0:T(1,128)}', space=vmem, size = 0x12000, scoped, tag = 'internal scratch']
  %s0 = inlined_call_operand.hbm [shape: f32[2,8,32], index: 0, kind: input, shape index: {}]
  %s1 = inlined_call_operand.hbm [shape: f32[32,96], index: 1, kind: input, shape index: {}]
  %s2 = inlined_call_operand.vmem [shape: f32[1,96], index: 2, kind: input, shape index: {}]
  %s3 = inlined_call_operand.hbm [shape: f32[2,8,32], index: 3, kind: output, shape index: {}]
  %s4 = sld [smem:[#allocation0]]
  $region53: #{tpu_custom_call.1} parent=0
    _
  %s6 = ssub.s32 1, %s4
  %s7 = scalar_select 0, %s6, %s4
  $region1: #{tpu_custom_call.1} parent=0
    #allocation2 [shape = 'u8[8192]{0}', space=vmem, size = 0x2000, scoped, tag = 'input window, operand 0']
    #allocation3 [shape = 's32[2]{0}', space=sflag, size = 0x8, scoped, tag = 'scoped memory for tpu_custom_call.1']
    #allocation4 [shape = 's32[2]{0}', space=sflag, size = 0x8, scoped, tag = 'scoped memory for tpu_custom_call.1']
    #allocation5 [shape = 'u8[16384]{0}', space=vmem, size = 0x4000, scoped, tag = 'input window, operand 1, single buffered']
    #allocation6 [shape = 's32[1]{0}', space=sflag, size = 0x4, scoped, tag = 'scoped memory for tpu_custom_call.1']
    #allocation7 [shape = 'u8[8192]{0}', space=vmem, size = 0x2000, scoped, tag = 'output window, operand 0']
    %8 = vsyncpa [#allocation3], 0
    %s9 = scalar_lea.sflag [#allocation3], 1
    %10 = vsyncpa %s9, 0
    %11 = vsyncpa [#allocation6], 0
    %12 = vsyncpa [#allocation4], 0
    %s13 = scalar_lea.sflag [#allocation4], 1
    %14 = vsyncpa %s13, 0
    loop: start=0, step=1, limit=4
    $region2: #{tpu_custom_call.1} parent=1 // loop_pre_header
      _
    $region3: #{tpu_custom_call.1} parent=1 // loop_header
      %s16 = sphi 0, %s20
      %p17 = scmp.ge.s32.totalorder %s16, 4
      %s26 = sphi 0, %s28
      %s29 = sphi 0, %s26
      %s30 = sphi 0, %s29
      %s46 = sphi 0, %s30
      %s50 = sphi 0, %s50
      %s52 = sphi 0, %s50
      %s53 = sphi 0, %s52
      %s67 = sphi 0, %s53
      %s71 = sphi 0, %s71
      %s73 = sphi 0, %s71
      %s74 = sphi 0, %s73
      %s88 = sphi 0, %s74
      %s94 = sphi 0, %s96
      %s97 = sphi 0, %s94
      %s98 = sphi 0, %s97
      %s114 = sphi 0, %s98
    $region4: #{tpu_custom_call.1} parent=1 // loop_header_branch
      %19 = sbr.rel (%p17) target = $region8
    $region5: #{tpu_custom_call.1} parent=1 // loop_body
      %s21 = ssub.s32 %s16, 1
      %s22 = ssub.s32 %s16, 2
      %s23 = sadd.s32 %s16, 1
      %s24 = ssub.s32 %s16, %s23
      %p25 = scmp.eq.s32.totalorder %s24, 0
      %s27 = sadd.s32 %s26, 1
      %s28 = scalar_select %p25, %s26, %s27
      %p31 = pneg %p25
      %p32 = scmp.eq.s32.totalorder %s16, 1
      %p33 = por %p31, %p32
      %p34 = scmp.ne.s32.totalorder %s26, %s29
      %p35 = scmp.eq.s32.totalorder %s16, 0
      %p36 = por %p34, %p35
      %p37 = scmp.ne.s32.totalorder %s26, %s29
      %p38 = scmp.eq.s32.totalorder %s21, 1
      %p39 = por %p37, %p38
      %p40 = scmp.ne.s32.totalorder %s29, %s30
      %p41 = scmp.eq.s32.totalorder %s21, 0
      %p42 = por %p40, %p41
      %p43 = scmp.ne.s32.totalorder %s29, %s30
      %p44 = scmp.eq.s32.totalorder %s22, 1
      %p45 = por %p43, %p44
      %p47 = scmp.ne.s32.totalorder %s30, %s46
      %p48 = scmp.eq.s32.totalorder %s22, 0
      %p49 = por %p47, %p48
      %s51 = sadd.s32 %s50, 1
      %p54 = scmp.eq.s32.totalorder %s16, 1
      %p55 = scmp.ne.s32.totalorder %s50, %s52
      %p56 = scmp.eq.s32.totalorder %s16, 0
      %p57 = por %p55, %p56
      %p58 = scmp.ne.s32.totalorder %s50, %s52
      %p59 = scmp.eq.s32.totalorder %s21, 1
      %p60 = por %p58, %p59
      %p61 = scmp.ne.s32.totalorder %s52, %s53
      %p62 = scmp.eq.s32.totalorder %s21, 0
      %p63 = por %p61, %p62
      %p64 = scmp.ne.s32.totalorder %s52, %s53
      %p65 = scmp.eq.s32.totalorder %s22, 1
      %p66 = por %p64, %p65
      %p68 = scmp.ne.s32.totalorder %s53, %s67
      %p69 = scmp.eq.s32.totalorder %s22, 0
      %p70 = por %p68, %p69
      %s72 = sadd.s32 %s71, 1
      %p75 = scmp.eq.s32.totalorder %s16, 1
      %p76 = scmp.ne.s32.totalorder %s71, %s73
      %p77 = scmp.eq.s32.totalorder %s16, 0
      %p78 = por %p76, %p77
      %p79 = scmp.ne.s32.totalorder %s71, %s73
      %p80 = scmp.eq.s32.totalorder %s21, 1
      %p81 = por %p79, %p80
      %p82 = scmp.ne.s32.totalorder %s73, %s74
      %p83 = scmp.eq.s32.totalorder %s21, 0
      %p84 = por %p82, %p83
      %p85 = scmp.ne.s32.totalorder %s73, %s74
      %p86 = scmp.eq.s32.totalorder %s22, 1
      %p87 = por %p85, %p86
      %p89 = scmp.ne.s32.totalorder %s74, %s88
      %p90 = scmp.eq.s32.totalorder %s22, 0
      %p91 = por %p89, %p90
      %s92 = ssub.s32 %s16, %s23
      %p93 = scmp.eq.s32.totalorder %s92, 0
      %s95 = sadd.s32 %s94, 1
      %s96 = scalar_select %p93, %s94, %s95
      %p99 = pneg %p93
      %p100 = scmp.eq.s32.totalorder %s16, 1
      %p101 = por %p99, %p100
      %p102 = scmp.ne.s32.totalorder %s94, %s97
      %p103 = scmp.eq.s32.totalorder %s16, 0
      %p104 = por %p102, %p103
      %p105 = scmp.ne.s32.totalorder %s94, %s97
      %p106 = scmp.eq.s32.totalorder %s21, 1
      %p107 = por %p105, %p106
      %p108 = scmp.ne.s32.totalorder %s97, %s98
      %p109 = scmp.eq.s32.totalorder %s21, 0
      %p110 = por %p108, %p109
      %p111 = scmp.ne.s32.totalorder %s97, %s98
      %p112 = scmp.eq.s32.totalorder %s22, 1
      %p113 = por %p111, %p112
      %p115 = scmp.ne.s32.totalorder %s98, %s114
      %p116 = scmp.eq.s32.totalorder %s22, 0
      %p117 = por %p115, %p116
      %p118 = scmp.le.s32.totalorder 1, %s16
      %p119 = scmp.lt.s32.totalorder %s16, 3
      %p120 = pnand %p118, %p119
      %p121 = pneg %p120
      // Predicated region
      $region9: #{tpu_custom_call.1} parent=5 // pred_check
        _
      $region10: #{tpu_custom_call.1} parent=5 // pred_check_branch
        %123 = sbr.rel (%p120) target = $region12
      $region11: #{tpu_custom_call.1} parent=5 // pred_region
        %s124 = ssub.s32 %s16, 1
        // Predicated region
        $region13: #{tpu_custom_call.1} parent=11 // pred_check
          %p125 = pneg %p63
        $region14: #{tpu_custom_call.1} parent=11 // pred_check_branch
          %127 = sbr.rel (%p125) target = $region16
        $region15: #{tpu_custom_call.1} parent=11 // pred_region
          %s129 = ssub.s32 512, 512
          %130 = vsyncadd [#allocation6], %s129
          %s131 = sshll.u32 [#allocation5], 4
          %s132 = int_to_ptr.vmem [resolvable:$true] %s131
          %137 = dma.hbm_to_vmem [thread:$0]  %s1, 512, %s132, [#allocation6], 128, 128, 8
        $region16: #{tpu_custom_call.1} parent=11 // pred_fallthru
          _
        // Predicated region
        $region17: #{tpu_custom_call.1} parent=11 // pred_check
          %p138 = pneg %p84
        $region18: #{tpu_custom_call.1} parent=11 // pred_check_branch
          %140 = sbr.rel (%p138) target = $region20
        $region19: #{tpu_custom_call.1} parent=11 // pred_region
          _
        $region20: #{tpu_custom_call.1} parent=11 // pred_fallthru
          _
      $region12: #{tpu_custom_call.1} parent=5 // pred_fallthru
        _
      %p141 = scmp.lt.s32.totalorder %s16, 2
      // Predicated region
      $region21: #{tpu_custom_call.1} parent=5 // pred_check
        %p142 = pneg %p141
      $region22: #{tpu_custom_call.1} parent=5 // pred_check_branch
        %144 = sbr.rel (%p142) target = $region24
      $region23: #{tpu_custom_call.1} parent=5 // pred_region
        // Predicated region
        $region25: #{tpu_custom_call.1} parent=23 // pred_check
          %p145 = pneg %p36
        $region26: #{tpu_custom_call.1} parent=23 // pred_check_branch
          %147 = sbr.rel (%p145) target = $region28
        $region27: #{tpu_custom_call.1} parent=23 // pred_region
          %s148 = sand.u32 %s26, 1
          %s149 = scalar_lea.sflag [#allocation3], %s148
          %s150 = sand.u32 %s26, 1
          %s151 = smul.addr %s150, 8
          %s152 = scalar_lea.vmem [#allocation2], %s151
          %s154 = ssub.s32 128, 128
          %155 = vsyncadd %s149, %s154
          %s156 = smul.addr %s16, 128
          %s157 = scalar_lea.hbm %s0, %s156
          %s159 = sshll.u32 %s152, 4
          %s160 = int_to_ptr.vmem [resolvable:$true] %s159
          %162 = dma.hbm_to_vmem [thread:$0]  %s157, 128, %s160, %s149
        $region28: #{tpu_custom_call.1} parent=23 // pred_fallthru
          _
      $region24: #{tpu_custom_call.1} parent=5 // pred_fallthru
        _
      %p163 = scmp.le.s32.totalorder 1, %s16
      %p164 = scmp.lt.s32.totalorder %s16, 3
      %p165 = pnand %p163, %p164
      %p166 = pneg %p165
      // Predicated region
      $region29: #{tpu_custom_call.1} parent=5 // pred_check
        _
      $region30: #{tpu_custom_call.1} parent=5 // pred_check_branch
        %168 = sbr.rel (%p165) target = $region32
      $region31: #{tpu_custom_call.1} parent=5 // pred_region
        %s169 = ssub.s32 %s16, 1
        %s170 = sand.u32 %s29, 1
        %s171 = scalar_lea.sflag [#allocation3], %s170
        %s172 = sand.u32 %s29, 1
        %s173 = smul.addr %s172, 8
        %s174 = scalar_lea.vmem [#allocation2], %s173
        // Predicated region
        $region33: #{tpu_custom_call.1} parent=31 // pred_check
          %p175 = pneg %p42
        $region34: #{tpu_custom_call.1} parent=31 // pred_check_branch
          %177 = sbr.rel (%p175) target = $region36
        $region35: #{tpu_custom_call.1} parent=31 // pred_region
          %178 = dma.done %s171, 128
        $region36: #{tpu_custom_call.1} parent=31 // pred_fallthru
          _
        // Predicated region
        $region37: #{tpu_custom_call.1} parent=31 // pred_check
          %p179 = pneg %p63
        $region38: #{tpu_custom_call.1} parent=31 // pred_check_branch
          %181 = sbr.rel (%p179) target = $region40
        $region39: #{tpu_custom_call.1} parent=31 // pred_region
          %182 = dma.done [#allocation6], 512
        $region40: #{tpu_custom_call.1} parent=31 // pred_fallthru
          _
        %s183 = sand.u32 %s29, 1
        %s184 = scalar_lea.sflag [#allocation3], %s183
        %s185 = sand.u32 %s29, 1
        %s186 = smul.addr %s185, 8
        %s187 = scalar_lea.vmem [#allocation2], %s186
        %p188 = pneg %p42
        %p189 = pneg %p39
        %p190 = pneg %p63
        %p191 = pneg %p60
        %p192 = pneg %p84
        %p193 = pneg %p81
        %p194 = pneg %p110
        %p195 = pneg %p107
        %s196 = sand.u32 %s97, 1
        %s197 = scalar_lea.sflag [#allocation4], %s196
        %s198 = sand.u32 %s97, 1
        %s199 = smul.addr %s198, 8
        %s200 = scalar_lea.vmem [#allocation7], %s199
        %v201 = vld [vmem:[%s174] sm:$0xff]
        %v202 = vld [vmem:[#allocation5] sm:$0xff]
        %v203 = vld [vmem:[#allocation5 + $0x8] sm:$0xff]
        %v204 = vld [vmem:[#allocation5 + $0x10] sm:$0xff]
        %v205 = vld [vmem:[#allocation5 + $0x18] sm:$0xff]
        %v206 = vld [vmem:[%s2] sm:$0x1]
        %v208 = vlaneseq
        %v209 = vshrl.u32 %v208, 7
        %v210 = vsub.s32 0, %v209
        %v211 = vrot.slane %v206, %v210
        %vm213 = vcmask 261120
        %v215 = vsel %vm213, %v201, 0
        %217 = vmatprep.subr.mxu0 0.0
        %218 = vmatpush1.msra.mxu0 0.0
        %219 = vmatprep.subr.mxu0 0.0
        %220 = vmatpush1.msra.mxu0 0.0
        %221 = vmatprep.subr.mxu0 0.0
        %222 = vmatpush1.msra.mxu0 0.0
        %223 = vmatprep.subr.mxu0 0.0
        %224 = vmatpush1.msra.mxu0 0.0
        %225 = vmatprep.subr.mxu0 0.0
        %226 = vmatpush1.msra.mxu0 0.0
        %227 = vmatprep.subr.mxu0 0.0
        %228 = vmatpush1.msra.mxu0 0.0
        %229 = vmatprep.subr.mxu0 0.0
        %230 = vmatpush1.msra.mxu0 0.0
        %231 = vmatprep.subr.mxu0 0.0
        %232 = vmatpush1.msra.mxu0 0.0
        %233 = vmatprep.subr.mxu0 0.0
        %234 = vmatpush1.msra.mxu0 0.0
        %235 = vmatprep.subr.mxu0 0.0
        %236 = vmatpush1.msra.mxu0 0.0
        %237 = vmatprep.subr.mxu0 0.0
        %238 = vmatpush1.msra.mxu0 0.0
        %239 = vmatprep.subr.mxu0 0.0
        %240 = vmatpush1.msra.mxu0 0.0
        %241 = vmatprep.subr.mxu0 0.0
        %242 = vmatpush1.msra.mxu0 %v205
        %243 = vmatprep.subr.mxu0 0.0
        %244 = vmatpush1.msra.mxu0 %v204
        %245 = vmatprep.subr.mxu0 0.0
        %246 = vmatpush1.msra.mxu0 %v203
        %247 = vmatprep.subr.mxu0 0.0
        %248 = vmatpush1.msra.mxu0 %v202
        %249 = vmatprep.subr.mxu0 0.0
        %250 = vmatpush2.msra.mxu0 0.0
        %251 = vmatprep.subr.mxu0 0.0
        %252 = vmatpush2.msra.mxu0 0.0
        %253 = vmatprep.subr.mxu0 0.0
        %254 = vmatpush2.msra.mxu0 0.0
        %255 = vmatprep.subr.mxu0 0.0
        %256 = vmatpush2.msra.mxu0 0.0
        %257 = vmatprep.subr.mxu0 0.0
        %258 = vmatpush2.msra.mxu0 0.0
        %259 = vmatprep.subr.mxu0 0.0
        %260 = vmatpush2.msra.mxu0 0.0
        %261 = vmatprep.subr.mxu0 0.0
        %262 = vmatpush2.msra.mxu0 0.0
        %263 = vmatprep.subr.mxu0 0.0
        %264 = vmatpush2.msra.mxu0 0.0
        %265 = vmatprep.subr.mxu0 0.0
        %266 = vmatpush2.msra.mxu0 0.0
        %267 = vmatprep.subr.mxu0 0.0
        %268 = vmatpush2.msra.mxu0 0.0
        %269 = vmatprep.subr.mxu0 0.0
        %270 = vmatpush2.msra.mxu0 0.0
        %271 = vmatprep.subr.mxu0 0.0
        %272 = vmatpush2.msra.mxu0 0.0
        %273 = vmatprep.subr.mxu0 0.0
        %274 = vmatpush2.msra.mxu0 0.0
        %275 = vmatprep.subr.mxu0 0.0
        %276 = vmatpush2.msra.mxu0 0.0
        %277 = vmatprep.subr.mxu0 0.0
        %278 = vmatpush2.msra.mxu0 0.0
        %279 = vmatprep.subr.mxu0 0.0
        %280 = vmatpush2.msra.mxu0 0.0
        %281 = vmatprep.mubr.f32.mxu0 0.0
        %282 = vmatmul.mubr.f32.gmra.mxu0 %v215
        %v283 = vpop.f32.mrf.mxu0
        %v284 = vadd.f32 %v211, %v283
        %v285 = vpop.f32.mrf.mxu0
        %286 = vdwg.mxu0
        %288 = vrot.lane.b32.xlu0 %v284, 96
        %v289 = vpop.permute.xlu0 %288
        %vm290 = vcmask 64512
        %v291 = vsel %vm290, %v284, 0
        %v293 = vsel %vm290, %v289, 0
        %295 = vmatprep.subr.mxu0 0.0
        %296 = vmatpush1.xpose.msra.mxu0 0.0
        %297 = vmatprep.subr.mxu0 0.0
        %298 = vmatpush1.xpose.msra.mxu0 0.0
        %299 = vmatprep.subr.mxu0 0.0
        %300 = vmatpush1.xpose.msra.mxu0 0.0
        %301 = vmatprep.subr.mxu0 0.0
        %302 = vmatpush1.xpose.msra.mxu0 0.0
        %303 = vmatprep.subr.mxu0 0.0
        %304 = vmatpush1.xpose.msra.mxu0 0.0
        %305 = vmatprep.subr.mxu0 0.0
        %306 = vmatpush1.xpose.msra.mxu0 0.0
        %307 = vmatprep.subr.mxu0 0.0
        %308 = vmatpush1.xpose.msra.mxu0 0.0
        %309 = vmatprep.subr.mxu0 0.0
        %310 = vmatpush1.xpose.msra.mxu0 0.0
        %311 = vmatprep.subr.mxu0 0.0
        %312 = vmatpush1.xpose.msra.mxu0 0.0
        %313 = vmatprep.subr.mxu0 0.0
        %314 = vmatpush1.xpose.msra.mxu0 0.0
        %315 = vmatprep.subr.mxu0 0.0
        %316 = vmatpush1.xpose.msra.mxu0 0.0
        %317 = vmatprep.subr.mxu0 0.0
        %318 = vmatpush1.xpose.msra.mxu0 0.0
        %319 = vmatprep.subr.mxu0 0.0
        %320 = vmatpush1.xpose.msra.mxu0 0.0
        %321 = vmatprep.subr.mxu0 0.0
        %322 = vmatpush1.xpose.msra.mxu0 0.0
        %323 = vmatprep.subr.mxu0 0.0
        %324 = vmatpush1.xpose.msra.mxu0 0.0
        %325 = vmatprep.subr.mxu0 0.0
        %326 = vmatpush1.xpose.msra.mxu0 %v293
        %327 = vmatprep.subr.mxu0 0.0
        %328 = vmatpush2.xpose.msra.mxu0 0.0
        %329 = vmatprep.subr.mxu0 0.0
        %330 = vmatpush2.xpose.msra.mxu0 0.0
        %331 = vmatprep.subr.mxu0 0.0
        %332 = vmatpush2.xpose.msra.mxu0 0.0
        %333 = vmatprep.subr.mxu0 0.0
        %334 = vmatpush2.xpose.msra.mxu0 0.0
        %335 = vmatprep.subr.mxu0 0.0
        %336 = vmatpush2.xpose.msra.mxu0 0.0
        %337 = vmatprep.subr.mxu0 0.0
        %338 = vmatpush2.xpose.msra.mxu0 0.0
        %339 = vmatprep.subr.mxu0 0.0
        %340 = vmatpush2.xpose.msra.mxu0 0.0
        %341 = vmatprep.subr.mxu0 0.0
        %342 = vmatpush2.xpose.msra.mxu0 0.0
        %343 = vmatprep.subr.mxu0 0.0
        %344 = vmatpush2.xpose.msra.mxu0 0.0
        %345 = vmatprep.subr.mxu0 0.0
        %346 = vmatpush2.xpose.msra.mxu0 0.0
        %347 = vmatprep.subr.mxu0 0.0
        %348 = vmatpush2.xpose.msra.mxu0 0.0
        %349 = vmatprep.subr.mxu0 0.0
        %350 = vmatpush2.xpose.msra.mxu0 0.0
        %351 = vmatprep.subr.mxu0 0.0
        %352 = vmatpush2.xpose.msra.mxu0 0.0
        %353 = vmatprep.subr.mxu0 0.0
        %354 = vmatpush2.xpose.msra.mxu0 0.0
        %355 = vmatprep.subr.mxu0 0.0
        %356 = vmatpush2.xpose.msra.mxu0 0.0
        %357 = vmatprep.subr.mxu0 0.0
        %358 = vmatpush2.xpose.msra.mxu0 0.0
        %359 = vmatprep.mubr.f32.mxu0 0.0
        %360 = vmatmul.mubr.f32.gmra.mxu0 %v291
        %v361 = vpop.f32.mrf.mxu0
        %v362 = vadd.f32 0.0, %v361
        %v363 = vpop.f32.mrf.mxu0
        %364 = vdwg.mxu0
        %v365 = vmul.f32 %v362, 0.35355338
        %v366 = vsel %vm290, %v365, -inf
        %367 = vmax.xlane.f32.xlu0 %v366
        %v368 = vpop.xlane.xlu0 %367
        %v369 = vsub.f32 %v365, %v368
        %v370 = vmul.f32 %v369, 1.442695
        %v371 = vpow.pop %v370
        %v372 = vsel %vm290, %v371, 0.0
        %373 = vadd.xlane.f32.xlu0 %v372
        %v374 = vpop.xlane.xlu0 %373
        %v375 = vrcp.pop %v374
        %v376 = vmul.f32 %v371, %v375
        %377 = vrot.lane.b32.xlu0 %v284, 64
        %v378 = vpop.permute.xlu0 %377
        %v381 = vsel %vm290, %v376, 0
        %383 = vmatprep.subr.mxu0 0.0
        %384 = vmatpush1.msra.mxu0 0.0
        %385 = vmatprep.subr.mxu0 0.0
        %386 = vmatpush1.msra.mxu0 0.0
        %387 = vmatprep.subr.mxu0 0.0
        %388 = vmatpush1.msra.mxu0 0.0
        %389 = vmatprep.subr.mxu0 0.0
        %390 = vmatpush1.msra.mxu0 0.0
        %391 = vmatprep.subr.mxu0 0.0
        %392 = vmatpush1.msra.mxu0 0.0
        %393 = vmatprep.subr.mxu0 0.0
        %394 = vmatpush1.msra.mxu0 0.0
        %395 = vmatprep.subr.mxu0 0.0
        %396 = vmatpush1.msra.mxu0 0.0
        %397 = vmatprep.subr.mxu0 0.0
        %398 = vmatpush1.msra.mxu0 0.0
        %399 = vmatprep.subr.mxu0 0.0
        %400 = vmatpush1.msra.mxu0 0.0
        %401 = vmatprep.subr.mxu0 0.0
        %402 = vmatpush1.msra.mxu0 0.0
        %403 = vmatprep.subr.mxu0 0.0
        %404 = vmatpush1.msra.mxu0 0.0
        %405 = vmatprep.subr.mxu0 0.0
        %406 = vmatpush1.msra.mxu0 0.0
        %407 = vmatprep.subr.mxu0 0.0
        %408 = vmatpush1.msra.mxu0 0.0
        %409 = vmatprep.subr.mxu0 0.0
        %410 = vmatpush1.msra.mxu0 0.0
        %411 = vmatprep.subr.mxu0 0.0
        %412 = vmatpush1.msra.mxu0 0.0
        %413 = vmatprep.subr.mxu0 0.0
        %414 = vmatpush1.msra.mxu0 %v378
        %415 = vmatprep.subr.mxu0 0.0
        %416 = vmatpush2.msra.mxu0 0.0
        %417 = vmatprep.subr.mxu0 0.0
        %418 = vmatpush2.msra.mxu0 0.0
        %419 = vmatprep.subr.mxu0 0.0
        %420 = vmatpush2.msra.mxu0 0.0
        %421 = vmatprep.subr.mxu0 0.0
        %422 = vmatpush2.msra.mxu0 0.0
        %423 = vmatprep.subr.mxu0 0.0
        %424 = vmatpush2.msra.mxu0 0.0
        %425 = vmatprep.subr.mxu0 0.0
        %426 = vmatpush2.msra.mxu0 0.0
        %427 = vmatprep.subr.mxu0 0.0
        %428 = vmatpush2.msra.mxu0 0.0
        %429 = vmatprep.subr.mxu0 0.0
        %430 = vmatpush2.msra.mxu0 0.0
        %431 = vmatprep.subr.mxu0 0.0
        %432 = vmatpush2.msra.mxu0 0.0
        %433 = vmatprep.subr.mxu0 0.0
        %434 = vmatpush2.msra.mxu0 0.0
        %435 = vmatprep.subr.mxu0 0.0
        %436 = vmatpush2.msra.mxu0 0.0
        %437 = vmatprep.subr.mxu0 0.0
        %438 = vmatpush2.msra.mxu0 0.0
        %439 = vmatprep.subr.mxu0 0.0
        %440 = vmatpush2.msra.mxu0 0.0
        %441 = vmatprep.subr.mxu0 0.0
        %442 = vmatpush2.msra.mxu0 0.0
        %443 = vmatprep.subr.mxu0 0.0
        %444 = vmatpush2.msra.mxu0 0.0
        %445 = vmatprep.subr.mxu0 0.0
        %446 = vmatpush2.msra.mxu0 0.0
        %447 = vmatprep.mubr.f32.mxu0 0.0
        %448 = vmatmul.mubr.f32.gmra.mxu0 %v381
        %v449 = vpop.f32.mrf.mxu0
        %v450 = vadd.f32 0.0, %v449
        %v451 = vpop.f32.mrf.mxu0
        %452 = vdwg.mxu0
        %453 = vrot.lane.b32.xlu0 %v284, 120
        %v454 = vpop.permute.xlu0 %453
        %455 = vrot.lane.b32.xlu0 %v284, 88
        %v456 = vpop.permute.xlu0 %455
        %v457 = vsel %vm290, %v454, 0
        %v459 = vsel %vm290, %v456, 0
        %461 = vmatprep.subr.mxu0 0.0
        %462 = vmatpush1.xpose.msra.mxu0 0.0
        %463 = vmatprep.subr.mxu0 0.0
        %464 = vmatpush1.xpose.msra.mxu0 0.0
        %465 = vmatprep.subr.mxu0 0.0
        %466 = vmatpush1.xpose.msra.mxu0 0.0
        %467 = vmatprep.subr.mxu0 0.0
        %468 = vmatpush1.xpose.msra.mxu0 0.0
        %469 = vmatprep.subr.mxu0 0.0
        %470 = vmatpush1.xpose.msra.mxu0 0.0
        %471 = vmatprep.subr.mxu0 0.0
        %472 = vmatpush1.xpose.msra.mxu0 0.0
        %473 = vmatprep.subr.mxu0 0.0
        %474 = vmatpush1.xpose.msra.mxu0 0.0
        %475 = vmatprep.subr.mxu0 0.0
        %476 = vmatpush1.xpose.msra.mxu0 0.0
        %477 = vmatprep.subr.mxu0 0.0
        %478 = vmatpush1.xpose.msra.mxu0 0.0
        %479 = vmatprep.subr.mxu0 0.0
        %480 = vmatpush1.xpose.msra.mxu0 0.0
        %481 = vmatprep.subr.mxu0 0.0
        %482 = vmatpush1.xpose.msra.mxu0 0.0
        %483 = vmatprep.subr.mxu0 0.0
        %484 = vmatpush1.xpose.msra.mxu0 0.0
        %485 = vmatprep.subr.mxu0 0.0
        %486 = vmatpush1.xpose.msra.mxu0 0.0
        %487 = vmatprep.subr.mxu0 0.0
        %488 = vmatpush1.xpose.msra.mxu0 0.0
        %489 = vmatprep.subr.mxu0 0.0
        %490 = vmatpush1.xpose.msra.mxu0 0.0
        %491 = vmatprep.subr.mxu0 0.0
        %492 = vmatpush1.xpose.msra.mxu0 %v459
        %493 = vmatprep.subr.mxu0 0.0
        %494 = vmatpush2.xpose.msra.mxu0 0.0
        %495 = vmatprep.subr.mxu0 0.0
        %496 = vmatpush2.xpose.msra.mxu0 0.0
        %497 = vmatprep.subr.mxu0 0.0
        %498 = vmatpush2.xpose.msra.mxu0 0.0
        %499 = vmatprep.subr.mxu0 0.0
        %500 = vmatpush2.xpose.msra.mxu0 0.0
        %501 = vmatprep.subr.mxu0 0.0
        %502 = vmatpush2.xpose.msra.mxu0 0.0
        %503 = vmatprep.subr.mxu0 0.0
        %504 = vmatpush2.xpose.msra.mxu0 0.0
        %505 = vmatprep.subr.mxu0 0.0
        %506 = vmatpush2.xpose.msra.mxu0 0.0
        %507 = vmatprep.subr.mxu0 0.0
        %508 = vmatpush2.xpose.msra.mxu0 0.0
        %509 = vmatprep.subr.mxu0 0.0
        %510 = vmatpush2.xpose.msra.mxu0 0.0
        %511 = vmatprep.subr.mxu0 0.0
        %512 = vmatpush2.xpose.msra.mxu0 0.0
        %513 = vmatprep.subr.mxu0 0.0
        %514 = vmatpush2.xpose.msra.mxu0 0.0
        %515 = vmatprep.subr.mxu0 0.0
        %516 = vmatpush2.xpose.msra.mxu0 0.0
        %517 = vmatprep.subr.mxu0 0.0
        %518 = vmatpush2.xpose.msra.mxu0 0.0
        %519 = vmatprep.subr.mxu0 0.0
        %520 = vmatpush2.xpose.msra.mxu0 0.0
        %521 = vmatprep.subr.mxu0 0.0
        %522 = vmatpush2.xpose.msra.mxu0 0.0
        %523 = vmatprep.subr.mxu0 0.0
        %524 = vmatpush2.xpose.msra.mxu0 0.0
        %525 = vmatprep.mubr.f32.mxu0 0.0
        %526 = vmatmul.mubr.f32.gmra.mxu0 %v457
        %v527 = vpop.f32.mrf.mxu0
        %v528 = vadd.f32 0.0, %v527
        %v529 = vpop.f32.mrf.mxu0
        %530 = vdwg.mxu0
        %v531 = vmul.f32 %v528, 0.35355338
        %v532 = vsel %vm290, %v531, -inf
        %533 = vmax.xlane.f32.xlu0 %v532
        %v534 = vpop.xlane.xlu0 %533
        %v535 = vsub.f32 %v531, %v534
        %v536 = vmul.f32 %v535, 1.442695
        %v537 = vpow.pop %v536
        %v538 = vsel %vm290, %v537, 0.0
        %539 = vadd.xlane.f32.xlu0 %v538
        %v540 = vpop.xlane.xlu0 %539
        %v541 = vrcp.pop %v540
        %v542 = vmul.f32 %v537, %v541
        %543 = vrot.lane.b32.xlu0 %v284, 56
        %v544 = vpop.permute.xlu0 %543
        %v547 = vsel %vm290, %v542, 0
        %549 = vmatprep.subr.mxu0 0.0
        %550 = vmatpush1.msra.mxu0 0.0
        %551 = vmatprep.subr.mxu0 0.0
        %552 = vmatpush1.msra.mxu0 0.0
        %553 = vmatprep.subr.mxu0 0.0
        %554 = vmatpush1.msra.mxu0 0.0
        %555 = vmatprep.subr.mxu0 0.0
        %556 = vmatpush1.msra.mxu0 0.0
        %557 = vmatprep.subr.mxu0 0.0
        %558 = vmatpush1.msra.mxu0 0.0
        %559 = vmatprep.subr.mxu0 0.0
        %560 = vmatpush1.msra.mxu0 0.0
        %561 = vmatprep.subr.mxu0 0.0
        %562 = vmatpush1.msra.mxu0 0.0
        %563 = vmatprep.subr.mxu0 0.0
        %564 = vmatpush1.msra.mxu0 0.0
        %565 = vmatprep.subr.mxu0 0.0
        %566 = vmatpush1.msra.mxu0 0.0
        %567 = vmatprep.subr.mxu0 0.0
        %568 = vmatpush1.msra.mxu0 0.0
        %569 = vmatprep.subr.mxu0 0.0
        %570 = vmatpush1.msra.mxu0 0.0
        %571 = vmatprep.subr.mxu0 0.0
        %572 = vmatpush1.msra.mxu0 0.0
        %573 = vmatprep.subr.mxu0 0.0
        %574 = vmatpush1.msra.mxu0 0.0
        %575 = vmatprep.subr.mxu0 0.0
        %576 = vmatpush1.msra.mxu0 0.0
        %577 = vmatprep.subr.mxu0 0.0
        %578 = vmatpush1.msra.mxu0 0.0
        %579 = vmatprep.subr.mxu0 0.0
        %580 = vmatpush1.msra.mxu0 %v544
        %581 = vmatprep.subr.mxu0 0.0
        %582 = vmatpush2.msra.mxu0 0.0
        %583 = vmatprep.subr.mxu0 0.0
        %584 = vmatpush2.msra.mxu0 0.0
        %585 = vmatprep.subr.mxu0 0.0
        %586 = vmatpush2.msra.mxu0 0.0
        %587 = vmatprep.subr.mxu0 0.0
        %588 = vmatpush2.msra.mxu0 0.0
        %589 = vmatprep.subr.mxu0 0.0
        %590 = vmatpush2.msra.mxu0 0.0
        %591 = vmatprep.subr.mxu0 0.0
        %592 = vmatpush2.msra.mxu0 0.0
        %593 = vmatprep.subr.mxu0 0.0
        %594 = vmatpush2.msra.mxu0 0.0
        %595 = vmatprep.subr.mxu0 0.0
        %596 = vmatpush2.msra.mxu0 0.0
        %597 = vmatprep.subr.mxu0 0.0
        %598 = vmatpush2.msra.mxu0 0.0
        %599 = vmatprep.subr.mxu0 0.0
        %600 = vmatpush2.msra.mxu0 0.0
        %601 = vmatprep.subr.mxu0 0.0
        %602 = vmatpush2.msra.mxu0 0.0
        %603 = vmatprep.subr.mxu0 0.0
        %604 = vmatpush2.msra.mxu0 0.0
        %605 = vmatprep.subr.mxu0 0.0
        %606 = vmatpush2.msra.mxu0 0.0
        %607 = vmatprep.subr.mxu0 0.0
        %608 = vmatpush2.msra.mxu0 0.0
        %609 = vmatprep.subr.mxu0 0.0
        %610 = vmatpush2.msra.mxu0 0.0
        %611 = vmatprep.subr.mxu0 0.0
        %612 = vmatpush2.msra.mxu0 0.0
        %613 = vmatprep.mubr.f32.mxu0 0.0
        %614 = vmatmul.mubr.f32.gmra.mxu0 %v547
        %v615 = vpop.f32.mrf.mxu0
        %v616 = vadd.f32 0.0, %v615
        %v617 = vpop.f32.mrf.mxu0
        %618 = vdwg.mxu0
        %619 = vrot.lane.b32.xlu0 %v284, 112
        %v620 = vpop.permute.xlu0 %619
        %621 = vrot.lane.b32.xlu0 %v284, 80
        %v622 = vpop.permute.xlu0 %621
        %v623 = vsel %vm290, %v620, 0
        %v625 = vsel %vm290, %v622, 0
        %627 = vmatprep.subr.mxu0 0.0
        %628 = vmatpush1.xpose.msra.mxu0 0.0
        %629 = vmatprep.subr.mxu0 0.0
        %630 = vmatpush1.xpose.msra.mxu0 0.0
        %631 = vmatprep.subr.mxu0 0.0
        %632 = vmatpush1.xpose.msra.mxu0 0.0
        %633 = vmatprep.subr.mxu0 0.0
        %634 = vmatpush1.xpose.msra.mxu0 0.0
        %635 = vmatprep.subr.mxu0 0.0
        %636 = vmatpush1.xpose.msra.mxu0 0.0
        %637 = vmatprep.subr.mxu0 0.0
        %638 = vmatpush1.xpose.msra.mxu0 0.0
        %639 = vmatprep.subr.mxu0 0.0
        %640 = vmatpush1.xpose.msra.mxu0 0.0
        %641 = vmatprep.subr.mxu0 0.0
        %642 = vmatpush1.xpose.msra.mxu0 0.0
        %643 = vmatprep.subr.mxu0 0.0
        %644 = vmatpush1.xpose.msra.mxu0 0.0
        %645 = vmatprep.subr.mxu0 0.0
        %646 = vmatpush1.xpose.msra.mxu0 0.0
        %647 = vmatprep.subr.mxu0 0.0
        %648 = vmatpush1.xpose.msra.mxu0 0.0
        %649 = vmatprep.subr.mxu0 0.0
        %650 = vmatpush1.xpose.msra.mxu0 0.0
        %651 = vmatprep.subr.mxu0 0.0
        %652 = vmatpush1.xpose.msra.mxu0 0.0
        %653 = vmatprep.subr.mxu0 0.0
        %654 = vmatpush1.xpose.msra.mxu0 0.0
        %655 = vmatprep.subr.mxu0 0.0
        %656 = vmatpush1.xpose.msra.mxu0 0.0
        %657 = vmatprep.subr.mxu0 0.0
        %658 = vmatpush1.xpose.msra.mxu0 %v625
        %659 = vmatprep.subr.mxu0 0.0
        %660 = vmatpush2.xpose.msra.mxu0 0.0
        %661 = vmatprep.subr.mxu0 0.0
        %662 = vmatpush2.xpose.msra.mxu0 0.0
        %663 = vmatprep.subr.mxu0 0.0
        %664 = vmatpush2.xpose.msra.mxu0 0.0
        %665 = vmatprep.subr.mxu0 0.0
        %666 = vmatpush2.xpose.msra.mxu0 0.0
        %667 = vmatprep.subr.mxu0 0.0
        %668 = vmatpush2.xpose.msra.mxu0 0.0
        %669 = vmatprep.subr.mxu0 0.0
        %670 = vmatpush2.xpose.msra.mxu0 0.0
        %671 = vmatprep.subr.mxu0 0.0
        %672 = vmatpush2.xpose.msra.mxu0 0.0
        %673 = vmatprep.subr.mxu0 0.0
        %674 = vmatpush2.xpose.msra.mxu0 0.0
        %675 = vmatprep.subr.mxu0 0.0
        %676 = vmatpush2.xpose.msra.mxu0 0.0
        %677 = vmatprep.subr.mxu0 0.0
        %678 = vmatpush2.xpose.msra.mxu0 0.0
        %679 = vmatprep.subr.mxu0 0.0
        %680 = vmatpush2.xpose.msra.mxu0 0.0
        %681 = vmatprep.subr.mxu0 0.0
        %682 = vmatpush2.xpose.msra.mxu0 0.0
        %683 = vmatprep.subr.mxu0 0.0
        %684 = vmatpush2.xpose.msra.mxu0 0.0
        %685 = vmatprep.subr.mxu0 0.0
        %686 = vmatpush2.xpose.msra.mxu0 0.0
        %687 = vmatprep.subr.mxu0 0.0
        %688 = vmatpush2.xpose.msra.mxu0 0.0
        %689 = vmatprep.subr.mxu0 0.0
        %690 = vmatpush2.xpose.msra.mxu0 0.0
        %691 = vmatprep.mubr.f32.mxu0 0.0
        %692 = vmatmul.mubr.f32.gmra.mxu0 %v623
        %v693 = vpop.f32.mrf.mxu0
        %v694 = vadd.f32 0.0, %v693
        %v695 = vpop.f32.mrf.mxu0
        %696 = vdwg.mxu0
        %v697 = vmul.f32 %v694, 0.35355338
        %v698 = vsel %vm290, %v697, -inf
        %699 = vmax.xlane.f32.xlu0 %v698
        %v700 = vpop.xlane.xlu0 %699
        %v701 = vsub.f32 %v697, %v700
        %v702 = vmul.f32 %v701, 1.442695
        %v703 = vpow.pop %v702
        %v704 = vsel %vm290, %v703, 0.0
        %705 = vadd.xlane.f32.xlu0 %v704
        %v706 = vpop.xlane.xlu0 %705
        %v707 = vrcp.pop %v706
        %v708 = vmul.f32 %v703, %v707
        %709 = vrot.lane.b32.xlu0 %v284, 48
        %v710 = vpop.permute.xlu0 %709
        %v713 = vsel %vm290, %v708, 0
        %715 = vmatprep.subr.mxu0 0.0
        %716 = vmatpush1.msra.mxu0 0.0
        %717 = vmatprep.subr.mxu0 0.0
        %718 = vmatpush1.msra.mxu0 0.0
        %719 = vmatprep.subr.mxu0 0.0
        %720 = vmatpush1.msra.mxu0 0.0
        %721 = vmatprep.subr.mxu0 0.0
        %722 = vmatpush1.msra.mxu0 0.0
        %723 = vmatprep.subr.mxu0 0.0
        %724 = vmatpush1.msra.mxu0 0.0
        %725 = vmatprep.subr.mxu0 0.0
        %726 = vmatpush1.msra.mxu0 0.0
        %727 = vmatprep.subr.mxu0 0.0
        %728 = vmatpush1.msra.mxu0 0.0
        %729 = vmatprep.subr.mxu0 0.0
        %730 = vmatpush1.msra.mxu0 0.0
        %731 = vmatprep.subr.mxu0 0.0
        %732 = vmatpush1.msra.mxu0 0.0
        %733 = vmatprep.subr.mxu0 0.0
        %734 = vmatpush1.msra.mxu0 0.0
        %735 = vmatprep.subr.mxu0 0.0
        %736 = vmatpush1.msra.mxu0 0.0
        %737 = vmatprep.subr.mxu0 0.0
        %738 = vmatpush1.msra.mxu0 0.0
        %739 = vmatprep.subr.mxu0 0.0
        %740 = vmatpush1.msra.mxu0 0.0
        %741 = vmatprep.subr.mxu0 0.0
        %742 = vmatpush1.msra.mxu0 0.0
        %743 = vmatprep.subr.mxu0 0.0
        %744 = vmatpush1.msra.mxu0 0.0
        %745 = vmatprep.subr.mxu0 0.0
        %746 = vmatpush1.msra.mxu0 %v710
        %747 = vmatprep.subr.mxu0 0.0
        %748 = vmatpush2.msra.mxu0 0.0
        %749 = vmatprep.subr.mxu0 0.0
        %750 = vmatpush2.msra.mxu0 0.0
        %751 = vmatprep.subr.mxu0 0.0
        %752 = vmatpush2.msra.mxu0 0.0
        %753 = vmatprep.subr.mxu0 0.0
        %754 = vmatpush2.msra.mxu0 0.0
        %755 = vmatprep.subr.mxu0 0.0
        %756 = vmatpush2.msra.mxu0 0.0
        %757 = vmatprep.subr.mxu0 0.0
        %758 = vmatpush2.msra.mxu0 0.0
        %759 = vmatprep.subr.mxu0 0.0
        %760 = vmatpush2.msra.mxu0 0.0
        %761 = vmatprep.subr.mxu0 0.0
        %762 = vmatpush2.msra.mxu0 0.0
        %763 = vmatprep.subr.mxu0 0.0
        %764 = vmatpush2.msra.mxu0 0.0
        %765 = vmatprep.subr.mxu0 0.0
        %766 = vmatpush2.msra.mxu0 0.0
        %767 = vmatprep.subr.mxu0 0.0
        %768 = vmatpush2.msra.mxu0 0.0
        %769 = vmatprep.subr.mxu0 0.0
        %770 = vmatpush2.msra.mxu0 0.0
        %771 = vmatprep.subr.mxu0 0.0
        %772 = vmatpush2.msra.mxu0 0.0
        %773 = vmatprep.subr.mxu0 0.0
        %774 = vmatpush2.msra.mxu0 0.0
        %775 = vmatprep.subr.mxu0 0.0
        %776 = vmatpush2.msra.mxu0 0.0
        %777 = vmatprep.subr.mxu0 0.0
        %778 = vmatpush2.msra.mxu0 0.0
        %779 = vmatprep.mubr.f32.mxu0 0.0
        %780 = vmatmul.mubr.f32.gmra.mxu0 %v713
        %v781 = vpop.f32.mrf.mxu0
        %v782 = vadd.f32 0.0, %v781
        %v783 = vpop.f32.mrf.mxu0
        %784 = vdwg.mxu0
        %785 = vrot.lane.b32.xlu0 %v284, 104
        %v786 = vpop.permute.xlu0 %785
        %787 = vrot.lane.b32.xlu0 %v284, 72
        %v788 = vpop.permute.xlu0 %787
        %v789 = vsel %vm290, %v786, 0
        %v791 = vsel %vm290, %v788, 0
        %793 = vmatprep.subr.mxu0 0.0
        %794 = vmatpush1.xpose.msra.mxu0 0.0
        %795 = vmatprep.subr.mxu0 0.0
        %796 = vmatpush1.xpose.msra.mxu0 0.0
        %797 = vmatprep.subr.mxu0 0.0
        %798 = vmatpush1.xpose.msra.mxu0 0.0
        %799 = vmatprep.subr.mxu0 0.0
        %800 = vmatpush1.xpose.msra.mxu0 0.0
        %801 = vmatprep.subr.mxu0 0.0
        %802 = vmatpush1.xpose.msra.mxu0 0.0
        %803 = vmatprep.subr.mxu0 0.0
        %804 = vmatpush1.xpose.msra.mxu0 0.0
        %805 = vmatprep.subr.mxu0 0.0
        %806 = vmatpush1.xpose.msra.mxu0 0.0
        %807 = vmatprep.subr.mxu0 0.0
        %808 = vmatpush1.xpose.msra.mxu0 0.0
        %809 = vmatprep.subr.mxu0 0.0
        %810 = vmatpush1.xpose.msra.mxu0 0.0
        %811 = vmatprep.subr.mxu0 0.0
        %812 = vmatpush1.xpose.msra.mxu0 0.0
        %813 = vmatprep.subr.mxu0 0.0
        %814 = vmatpush1.xpose.msra.mxu0 0.0
        %815 = vmatprep.subr.mxu0 0.0
        %816 = vmatpush1.xpose.msra.mxu0 0.0
        %817 = vmatprep.subr.mxu0 0.0
        %818 = vmatpush1.xpose.msra.mxu0 0.0
        %819 = vmatprep.subr.mxu0 0.0
        %820 = vmatpush1.xpose.msra.mxu0 0.0
        %821 = vmatprep.subr.mxu0 0.0
        %822 = vmatpush1.xpose.msra.mxu0 0.0
        %823 = vmatprep.subr.mxu0 0.0
        %824 = vmatpush1.xpose.msra.mxu0 %v791
        %825 = vmatprep.subr.mxu0 0.0
        %826 = vmatpush2.xpose.msra.mxu0 0.0
        %827 = vmatprep.subr.mxu0 0.0
        %828 = vmatpush2.xpose.msra.mxu0 0.0
        %829 = vmatprep.subr.mxu0 0.0
        %830 = vmatpush2.xpose.msra.mxu0 0.0
        %831 = vmatprep.subr.mxu0 0.0
        %832 = vmatpush2.xpose.msra.mxu0 0.0
        %833 = vmatprep.subr.mxu0 0.0
        %834 = vmatpush2.xpose.msra.mxu0 0.0
        %835 = vmatprep.subr.mxu0 0.0
        %836 = vmatpush2.xpose.msra.mxu0 0.0
        %837 = vmatprep.subr.mxu0 0.0
        %838 = vmatpush2.xpose.msra.mxu0 0.0
        %839 = vmatprep.subr.mxu0 0.0
        %840 = vmatpush2.xpose.msra.mxu0 0.0
        %841 = vmatprep.subr.mxu0 0.0
        %842 = vmatpush2.xpose.msra.mxu0 0.0
        %843 = vmatprep.subr.mxu0 0.0
        %844 = vmatpush2.xpose.msra.mxu0 0.0
        %845 = vmatprep.subr.mxu0 0.0
        %846 = vmatpush2.xpose.msra.mxu0 0.0
        %847 = vmatprep.subr.mxu0 0.0
        %848 = vmatpush2.xpose.msra.mxu0 0.0
        %849 = vmatprep.subr.mxu0 0.0
        %850 = vmatpush2.xpose.msra.mxu0 0.0
        %851 = vmatprep.subr.mxu0 0.0
        %852 = vmatpush2.xpose.msra.mxu0 0.0
        %853 = vmatprep.subr.mxu0 0.0
        %854 = vmatpush2.xpose.msra.mxu0 0.0
        %855 = vmatprep.subr.mxu0 0.0
        %856 = vmatpush2.xpose.msra.mxu0 0.0
        %857 = vmatprep.mubr.f32.mxu0 0.0
        %858 = vmatmul.mubr.f32.gmra.mxu0 %v789
        %v859 = vpop.f32.mrf.mxu0
        %v860 = vadd.f32 0.0, %v859
        %v861 = vpop.f32.mrf.mxu0
        %862 = vdwg.mxu0
        %v863 = vmul.f32 %v860, 0.35355338
        %v864 = vsel %vm290, %v863, -inf
        %865 = vmax.xlane.f32.xlu0 %v864
        %v866 = vpop.xlane.xlu0 %865
        %v867 = vsub.f32 %v863, %v866
        %v868 = vmul.f32 %v867, 1.442695
        %v869 = vpow.pop %v868
        %v870 = vsel %vm290, %v869, 0.0
        %871 = vadd.xlane.f32.xlu0 %v870
        %v872 = vpop.xlane.xlu0 %871
        %v873 = vrcp.pop %v872
        %v874 = vmul.f32 %v869, %v873
        %875 = vrot.lane.b32.xlu0 %v284, 40
        %v876 = vpop.permute.xlu0 %875
        %v879 = vsel %vm290, %v874, 0
        %881 = vmatprep.subr.mxu0 0.0
        %882 = vmatpush1.msra.mxu0 0.0
        %883 = vmatprep.subr.mxu0 0.0
        %884 = vmatpush1.msra.mxu0 0.0
        %885 = vmatprep.subr.mxu0 0.0
        %886 = vmatpush1.msra.mxu0 0.0
        %887 = vmatprep.subr.mxu0 0.0
        %888 = vmatpush1.msra.mxu0 0.0
        %889 = vmatprep.subr.mxu0 0.0
        %890 = vmatpush1.msra.mxu0 0.0
        %891 = vmatprep.subr.mxu0 0.0
        %892 = vmatpush1.msra.mxu0 0.0
        %893 = vmatprep.subr.mxu0 0.0
        %894 = vmatpush1.msra.mxu0 0.0
        %895 = vmatprep.subr.mxu0 0.0
        %896 = vmatpush1.msra.mxu0 0.0
        %897 = vmatprep.subr.mxu0 0.0
        %898 = vmatpush1.msra.mxu0 0.0
        %899 = vmatprep.subr.mxu0 0.0
        %900 = vmatpush1.msra.mxu0 0.0
        %901 = vmatprep.subr.mxu0 0.0
        %902 = vmatpush1.msra.mxu0 0.0
        %903 = vmatprep.subr.mxu0 0.0
        %904 = vmatpush1.msra.mxu0 0.0
        %905 = vmatprep.subr.mxu0 0.0
        %906 = vmatpush1.msra.mxu0 0.0
        %907 = vmatprep.subr.mxu0 0.0
        %908 = vmatpush1.msra.mxu0 0.0
        %909 = vmatprep.subr.mxu0 0.0
        %910 = vmatpush1.msra.mxu0 0.0
        %911 = vmatprep.subr.mxu0 0.0
        %912 = vmatpush1.msra.mxu0 %v876
        %913 = vmatprep.subr.mxu0 0.0
        %914 = vmatpush2.msra.mxu0 0.0
        %915 = vmatprep.subr.mxu0 0.0
        %916 = vmatpush2.msra.mxu0 0.0
        %917 = vmatprep.subr.mxu0 0.0
        %918 = vmatpush2.msra.mxu0 0.0
        %919 = vmatprep.subr.mxu0 0.0
        %920 = vmatpush2.msra.mxu0 0.0
        %921 = vmatprep.subr.mxu0 0.0
        %922 = vmatpush2.msra.mxu0 0.0
        %923 = vmatprep.subr.mxu0 0.0
        %924 = vmatpush2.msra.mxu0 0.0
        %925 = vmatprep.subr.mxu0 0.0
        %926 = vmatpush2.msra.mxu0 0.0
        %927 = vmatprep.subr.mxu0 0.0
        %928 = vmatpush2.msra.mxu0 0.0
        %929 = vmatprep.subr.mxu0 0.0
        %930 = vmatpush2.msra.mxu0 0.0
        %931 = vmatprep.subr.mxu0 0.0
        %932 = vmatpush2.msra.mxu0 0.0
        %933 = vmatprep.subr.mxu0 0.0
        %934 = vmatpush2.msra.mxu0 0.0
        %935 = vmatprep.subr.mxu0 0.0
        %936 = vmatpush2.msra.mxu0 0.0
        %937 = vmatprep.subr.mxu0 0.0
        %938 = vmatpush2.msra.mxu0 0.0
        %939 = vmatprep.subr.mxu0 0.0
        %940 = vmatpush2.msra.mxu0 0.0
        %941 = vmatprep.subr.mxu0 0.0
        %942 = vmatpush2.msra.mxu0 0.0
        %943 = vmatprep.subr.mxu0 0.0
        %944 = vmatpush2.msra.mxu0 0.0
        %945 = vmatprep.mubr.f32.mxu0 0.0
        %946 = vmatmul.mubr.f32.gmra.mxu0 %v879
        %v947 = vpop.f32.mrf.mxu0
        %v948 = vadd.f32 0.0, %v947
        %v949 = vpop.f32.mrf.mxu0
        %950 = vdwg.mxu0
        %952 = vrot.lane.b32.xlu0 %v616, 8
        %v953 = vpop.permute.xlu0 %952
        %956 = vrot.lane.b32.xlu0 %v782, 16
        %v957 = vpop.permute.xlu0 %956
        %960 = vrot.lane.b32.xlu0 %v948, 24
        %v961 = vpop.permute.xlu0 %960
        %v963 = vsel %vm290, %v450, %v953
        %vm964 = vcmask 130048
        %v965 = vsel %vm964, %v963, %v957
        %vm966 = vcmask 195584
        %v967 = vsel %vm966, %v965, %v961
        %968 = vst.msk [vmem:[%s200] sm:$0xff] %vm213, %v967
        %s969 = sand.u32 %s97, 1
        %s970 = scalar_lea.sflag [#allocation4], %s969
        %s971 = sand.u32 %s97, 1
        %s972 = smul.addr %s971, 8
        %s973 = scalar_lea.vmem [#allocation7], %s972
        // Predicated region
        $region41: #{tpu_custom_call.1} parent=31 // pred_check
          %p974 = pneg %p107
        $region42: #{tpu_custom_call.1} parent=31 // pred_check_branch
          %976 = sbr.rel (%p974) target = $region44
        $region43: #{tpu_custom_call.1} parent=31 // pred_region
          %s978 = ssub.s32 128, 128
          %979 = vsyncadd %s970, %s978
          %s980 = smul.addr %s21, 128
          %s981 = scalar_lea.hbm %s3, %s980
          %s983 = sshll.u32 %s973, 4
          %s984 = int_to_ptr.vmem [resolvable:$true] %s983
          %986 = dma.vmem_to_hbm [thread:$0]  %s984, 128, %s981, %s970
        $region44: #{tpu_custom_call.1} parent=31 // pred_fallthru
          _
      $region32: #{tpu_custom_call.1} parent=5 // pred_fallthru
        _
      %p987 = scmp.le.s32.totalorder 2, %s16
      // Predicated region
      $region45: #{tpu_custom_call.1} parent=5 // pred_check
        %p988 = pneg %p987
      $region46: #{tpu_custom_call.1} parent=5 // pred_check_branch
        %990 = sbr.rel (%p988) target = $region48
      $region47: #{tpu_custom_call.1} parent=5 // pred_region
        %s991 = ssub.s32 %s16, 2
        // Predicated region
        $region49: #{tpu_custom_call.1} parent=47 // pred_check
          %p992 = pneg %p113
        $region50: #{tpu_custom_call.1} parent=47 // pred_check_branch
          %994 = sbr.rel (%p992) target = $region52
        $region51: #{tpu_custom_call.1} parent=47 // pred_region
          %s995 = sand.u32 %s98, 1
          %s996 = scalar_lea.sflag [#allocation4], %s995
          %s997 = sand.u32 %s98, 1
          %s998 = smul.addr %s997, 8
          %s999 = scalar_lea.vmem [#allocation7], %s998
          %1000 = dma.done %s996, 128
        $region52: #{tpu_custom_call.1} parent=47 // pred_fallthru
          _
      $region48: #{tpu_custom_call.1} parent=5 // pred_fallthru
        _
    $region6: #{tpu_custom_call.1} parent=1 // loop_footer
      %s20 = sadd.s32 1, %s16
    $region7: #{tpu_custom_call.1} parent=1 // loop_footer_branch
      %15 = sbr.rel target = $region3
    $region8: #{tpu_custom_call.1} parent=1 // loop_exit
      _
    %1001 = vsyncpa [#allocation3], 1
    %s1002 = scalar_lea.sflag [#allocation3], 1
    %1003 = vsyncpa %s1002, 1
    %1004 = vsyncpa [#allocation6], 1
    %1005 = vsyncpa [#allocation4], 1
    %s1006 = scalar_lea.sflag [#allocation4], 1
    %1007 = vsyncpa %s1006, 1

</llo_original>
